<compile_context>
chip_gen: v5e
topology: v5e:2x2
jax: 0.10.0
libtpu: 0.0.40
codegen_flags: <defaults>
</compile_context>

<pallas_src>
import functools

import jax
import jax.numpy as jnp
from jax.experimental import pallas as pl
from jax.experimental.pallas import tpu as pltpu


def _tcl_kernel(x2_ref, wt_ref, o_ref):
    """x2_ref: (B, D1*D2*D3) bf16; wt_ref: (D1*D2*D3, N_pad) bf16;
    o_ref: (B, N_pad) f32.  Whole TCL contraction = one MXU matmul."""
    o_ref[...] = jnp.dot(
        x2_ref[...], wt_ref[...], preferred_element_type=jnp.float32
    ).astype(o_ref.dtype)


def make_tcl_weights(factor1, factor2, factor3):
    """Setup-time precompute (call once when parameters change).

    Returns (wt_padded, (R1, R2, R3)) where
      wt_padded: (D1*D2*D3, N_pad) bf16, N_pad = ceil(R1*R2*R3 / 128) * 128,
    such that  out[b, a, c, d] == (x.reshape(B,-1) @ wt_padded)[b, a*R2*R3+c*R3+d].
    """
    R1, _ = factor1.shape
    R2, _ = factor2.shape
    R3, _ = factor3.shape
    # W_full[a*R2*R3 + c*R3 + d, i*D2*D3 + j*D3 + k] = F1[a,i] F2[c,j] F3[d,k]
    w_full = jnp.kron(factor1, jnp.kron(factor2, factor3))
    wt = w_full.T                                   # (D1*D2*D3, R1*R2*R3)
    n = R1 * R2 * R3
    n_pad = ((n + 127) // 128) * 128                # lane-dense output width
    wt_padded = jnp.pad(wt, ((0, 0), (0, n_pad - n))).astype(jnp.bfloat16)
    return wt_padded, (R1, R2, R3)


@functools.partial(jax.jit, static_argnames=("r_shape",))
def tcl_forward(x, wt_padded, r_shape):
    """Pallas TCL forward. x: (B, D1, D2, D3); wt_padded from make_tcl_weights."""
    B, D1, D2, D3 = x.shape
    R1, R2, R3 = r_shape
    K = D1 * D2 * D3
    n_pad = wt_padded.shape[1]

    x2 = x.reshape(B, K).astype(jnp.bfloat16)       # lane-dense, last dim = K

    cost = pl.CostEstimate(
        flops=2 * B * K * n_pad,
        transcendentals=0,
        bytes_accessed=(x2.size * 2 + wt_padded.size * 2 + B * n_pad * 4),
    )

    vmem = pl.BlockSpec(memory_space=pltpu.MemorySpace.VMEM)
    out2 = pl.pallas_call(
        _tcl_kernel,
        out_shape=jax.ShapeDtypeStruct((B, n_pad), jnp.float32),
        in_specs=[vmem, vmem],
        out_specs=vmem,
        cost_estimate=cost,
    )(x2, wt_padded)

    return out2[:, : R1 * R2 * R3].reshape(B, R1, R2, R3)


if __name__ == "__main__":
    # Shapes consistent with the module: weight_size = x.shape = (2, 4, 16, 16),
    # ranks = (2, 3, 8, 8). factor0 (ranks[0], weight_size[0]) is created in
    # __init__ but unused in forward, so it is omitted here.
    B, D1, D2, D3 = 2, 4, 16, 16
    R1, R2, R3 = 3, 8, 8

    key = jax.random.PRNGKey(0)
    kx, k1, k2, k3 = jax.random.split(key, 4)
    x = jax.random.normal(kx, (B, D1, D2, D3), dtype=jnp.float32)
    factor1 = jax.random.normal(k1, (R1, D1), dtype=jnp.float32)  # torch.randn analog
    factor2 = jax.random.normal(k2, (R2, D2), dtype=jnp.float32)
    factor3 = jax.random.normal(k3, (R3, D3), dtype=jnp.float32)

    # Setup-time weight precompute (done once, not per forward call).
    wt_padded, r_shape = make_tcl_weights(factor1, factor2, factor3)
    wt_padded = jax.block_until_ready(wt_padded)

    out = tcl_forward(x, wt_padded, r_shape)
    out = jax.block_until_ready(out)

    # Pure-JAX high-precision reference (tensorly mode_dot chain).
    ref = jnp.einsum("bijk,ai,cj,dk->bacd", x, factor1, factor2, factor3,
                     precision=jax.lax.Precision.HIGHEST)
    assert out.shape == (B, R1, R2, R3), out.shape
    # Kernel operands are bf16 (MXU-native) with f32 accumulation; validate
    # with a relative Frobenius-norm check against the f32 reference.
    rel_err = float(jnp.linalg.norm(out - ref) / jnp.linalg.norm(ref))
    assert rel_err < 2e-2, rel_err

    print("KERNEL_OK")
</pallas_src>

<mosaic_0001>
module attributes {stable_mosaic.version = 11 : i64} {
  func.func @_tcl_kernel(%arg0: memref<2x1024xbf16, #tpu.memory_space<vmem>>, %arg1: memref<1024x256xbf16, #tpu.memory_space<vmem>>, %arg2: memref<2x256xf32, #tpu.memory_space<vmem>>) attributes {dimension_semantics = [], scalar_prefetch = 0 : i64, scratch_operands = 0 : i64, tpu.core_type = #tpu.core_type<tc>} {
    %c0 = arith.constant 0 : index
    %c0_0 = arith.constant 0 : index
    %0 = vector.load %arg0[%c0, %c0_0] : memref<2x1024xbf16, #tpu.memory_space<vmem>>, vector<2x1024xbf16>
    %c0_1 = arith.constant 0 : index
    %c0_2 = arith.constant 0 : index
    %1 = vector.load %arg1[%c0_1, %c0_2] : memref<1024x256xbf16, #tpu.memory_space<vmem>>, vector<1024x256xbf16>
    %cst = arith.constant dense<0.000000e+00> : vector<2x256xf32>
    %2 = tpu.matmul %0, %1, %cst {dimension_numbers = #tpu.dot_dimension_numbers<[1], [0], [0], [1], [0, 0, 1, 1], [], []>} : vector<2x1024xbf16>, vector<1024x256xbf16>, vector<2x256xf32> -> vector<2x256xf32>
    %c0_3 = arith.constant 0 : index
    %c0_4 = arith.constant 0 : index
    %3 = vector.load %arg2[%c0_3, %c0_4] : memref<2x256xf32, #tpu.memory_space<vmem>>, vector<2x256xf32>
    tpu.vector_store %arg2[%c0_3, %c0_4], %2 {strides = array<i32>} : memref<2x256xf32, #tpu.memory_space<vmem>>, vector<2x256xf32>,
    return
  }
}

</mosaic_0001>

<llo_original>
// kernel: tcl_forward.1
$region0: #{tcl_forward.1}
  #allocation0 [shape = 'u32[]', space=smem, size = 0x4, offset = 0x4, fixed_abs, tag = 'smem constant byte address 0x4 - core index']
  #allocation1 [shape = 'u32[72,128]{1,0:T(1,128)}', space=vmem, size = 0x9000, scoped, tag = 'internal scratch']
  %s0 = inlined_call_operand.vmem [shape: bf16[2,1024], index: 0, kind: input, shape index: {}]
  %s1 = inlined_call_operand.hbm [shape: bf16[1024,256], index: 1, kind: input, shape index: {}]
  %s2 = inlined_call_operand.vmem [shape: f32[2,256], index: 2, kind: output, shape index: {}]
  %s3 = sld [smem:[#allocation0]]
  $region22: #{tcl_forward.1} parent=0
    _
  %s5 = ssub.s32 1, %s3
  %s6 = scalar_select 0, %s5, %s3
  $region1: #{tcl_forward.1} parent=0
    #allocation2 [shape = 'u8[524288]{0}', space=vmem, size = 0x80000, scoped, tag = 'input window, operand 1, single buffered']
    #allocation3 [shape = 's32[1]{0}', space=sflag, size = 0x4, scoped, tag = 'scoped memory for tcl_forward.1']
    %7 = vsyncpa [#allocation3], 0
    // Predicated region
    $region2: #{tcl_forward.1} parent=1 // pred_check
      _
    $region3: #{tcl_forward.1} parent=1 // pred_check_branch
      %9 = sbr.rel (0) target = $region5
    $region4: #{tcl_forward.1} parent=1 // pred_region
      _
    $region5: #{tcl_forward.1} parent=1 // pred_fallthru
      _
    // Predicated region
    $region6: #{tcl_forward.1} parent=1 // pred_check
      _
    $region7: #{tcl_forward.1} parent=1 // pred_check_branch
      %11 = sbr.rel (0) target = $region9
    $region8: #{tcl_forward.1} parent=1 // pred_region
      %13 = vsyncadd [#allocation3], 0
      %s14 = sshll.u32 %s1, 4
      %s15 = int_to_ptr.hbm [resolvable:$true] %s14
      %s16 = sshll.u32 [#allocation2], 4
      %s17 = int_to_ptr.vmem [resolvable:$true] %s16
      %22 = dma.hbm_to_vmem [thread:$0]  %s15, 16384, %s17, [#allocation3], 128, 128, 8
    $region9: #{tcl_forward.1} parent=1 // pred_fallthru
      _
    // Predicated region
    $region10: #{tcl_forward.1} parent=1 // pred_check
      _
    $region11: #{tcl_forward.1} parent=1 // pred_check_branch
      %24 = sbr.rel (0) target = $region13
    $region12: #{tcl_forward.1} parent=1 // pred_region
      %26 = dma.done [#allocation3], 16384
    $region13: #{tcl_forward.1} parent=1 // pred_fallthru
      _
    %v27 = vld [vmem:[%s0] sm:$0xff]
    %v28 = vld [vmem:[#allocation2] sm:$0xff]
    %v29 = vld [vmem:[#allocation2 + $0x8] sm:$0xff]
    %v30 = vld [vmem:[#allocation2 + $0x10] sm:$0xff]
    %v31 = vld [vmem:[#allocation2 + $0x18] sm:$0xff]
    %v32 = vld [vmem:[#allocation2 + $0x20] sm:$0xff]
    %v33 = vld [vmem:[#allocation2 + $0x28] sm:$0xff]
    %v34 = vld [vmem:[#allocation2 + $0x30] sm:$0xff]
    %v35 = vld [vmem:[#allocation2 + $0x38] sm:$0xff]
    %v36 = vld [vmem:[#allocation2 + $0x40] sm:$0xff]
    %v37 = vld [vmem:[#allocation2 + $0x48] sm:$0xff]
    %v38 = vld [vmem:[#allocation2 + $0x50] sm:$0xff]
    %v39 = vld [vmem:[#allocation2 + $0x58] sm:$0xff]
    %v40 = vld [vmem:[#allocation2 + $0x60] sm:$0xff]
    %v41 = vld [vmem:[#allocation2 + $0x68] sm:$0xff]
    %v42 = vld [vmem:[#allocation2 + $0x70] sm:$0xff]
    %v43 = vld [vmem:[#allocation2 + $0x78] sm:$0xff]
    %v44 = vld [vmem:[#allocation2 + $0x80] sm:$0xff]
    %v45 = vld [vmem:[#allocation2 + $0x88] sm:$0xff]
    %v46 = vld [vmem:[#allocation2 + $0x90] sm:$0xff]
    %v47 = vld [vmem:[#allocation2 + $0x98] sm:$0xff]
    %v48 = vld [vmem:[#allocation2 + $0xa0] sm:$0xff]
    %v49 = vld [vmem:[#allocation2 + $0xa8] sm:$0xff]
    %v50 = vld [vmem:[#allocation2 + $0xb0] sm:$0xff]
    %v51 = vld [vmem:[#allocation2 + $0xb8] sm:$0xff]
    %v52 = vld [vmem:[#allocation2 + $0xc0] sm:$0xff]
    %v53 = vld [vmem:[#allocation2 + $0xc8] sm:$0xff]
    %v54 = vld [vmem:[#allocation2 + $0xd0] sm:$0xff]
    %v55 = vld [vmem:[#allocation2 + $0xd8] sm:$0xff]
    %v56 = vld [vmem:[#allocation2 + $0xe0] sm:$0xff]
    %v57 = vld [vmem:[#allocation2 + $0xe8] sm:$0xff]
    %v58 = vld [vmem:[#allocation2 + $0xf0] sm:$0xff]
    %v59 = vld [vmem:[#allocation2 + $0xf8] sm:$0xff]
    %v60 = vld [vmem:[#allocation2 + $0x100] sm:$0xff]
    %v61 = vld [vmem:[#allocation2 + $0x108] sm:$0xff]
    %v62 = vld [vmem:[#allocation2 + $0x110] sm:$0xff]
    %v63 = vld [vmem:[#allocation2 + $0x118] sm:$0xff]
    %v64 = vld [vmem:[#allocation2 + $0x120] sm:$0xff]
    %v65 = vld [vmem:[#allocation2 + $0x128] sm:$0xff]
    %v66 = vld [vmem:[#allocation2 + $0x130] sm:$0xff]
    %v67 = vld [vmem:[#allocation2 + $0x138] sm:$0xff]
    %v68 = vld [vmem:[#allocation2 + $0x140] sm:$0xff]
    %v69 = vld [vmem:[#allocation2 + $0x148] sm:$0xff]
    %v70 = vld [vmem:[#allocation2 + $0x150] sm:$0xff]
    %v71 = vld [vmem:[#allocation2 + $0x158] sm:$0xff]
    %v72 = vld [vmem:[#allocation2 + $0x160] sm:$0xff]
    %v73 = vld [vmem:[#allocation2 + $0x168] sm:$0xff]
    %v74 = vld [vmem:[#allocation2 + $0x170] sm:$0xff]
    %v75 = vld [vmem:[#allocation2 + $0x178] sm:$0xff]
    %v76 = vld [vmem:[#allocation2 + $0x180] sm:$0xff]
    %v77 = vld [vmem:[#allocation2 + $0x188] sm:$0xff]
    %v78 = vld [vmem:[#allocation2 + $0x190] sm:$0xff]
    %v79 = vld [vmem:[#allocation2 + $0x198] sm:$0xff]
    %v80 = vld [vmem:[#allocation2 + $0x1a0] sm:$0xff]
    %v81 = vld [vmem:[#allocation2 + $0x1a8] sm:$0xff]
    %v82 = vld [vmem:[#allocation2 + $0x1b0] sm:$0xff]
    %v83 = vld [vmem:[#allocation2 + $0x1b8] sm:$0xff]
    %v84 = vld [vmem:[#allocation2 + $0x1c0] sm:$0xff]
    %v85 = vld [vmem:[#allocation2 + $0x1c8] sm:$0xff]
    %v86 = vld [vmem:[#allocation2 + $0x1d0] sm:$0xff]
    %v87 = vld [vmem:[#allocation2 + $0x1d8] sm:$0xff]
    %v88 = vld [vmem:[#allocation2 + $0x1e0] sm:$0xff]
    %v89 = vld [vmem:[#allocation2 + $0x1e8] sm:$0xff]
    %v90 = vld [vmem:[#allocation2 + $0x1f0] sm:$0xff]
    %v91 = vld [vmem:[#allocation2 + $0x1f8] sm:$0xff]
    %v92 = vld [vmem:[#allocation2 + $0x200] sm:$0xff]
    %v93 = vld [vmem:[#allocation2 + $0x208] sm:$0xff]
    %v94 = vld [vmem:[#allocation2 + $0x210] sm:$0xff]
    %v95 = vld [vmem:[#allocation2 + $0x218] sm:$0xff]
    %v96 = vld [vmem:[#allocation2 + $0x220] sm:$0xff]
    %v97 = vld [vmem:[#allocation2 + $0x228] sm:$0xff]
    %v98 = vld [vmem:[#allocation2 + $0x230] sm:$0xff]
    %v99 = vld [vmem:[#allocation2 + $0x238] sm:$0xff]
    %v100 = vld [vmem:[#allocation2 + $0x240] sm:$0xff]
    %v101 = vld [vmem:[#allocation2 + $0x248] sm:$0xff]
    %v102 = vld [vmem:[#allocation2 + $0x250] sm:$0xff]
    %v103 = vld [vmem:[#allocation2 + $0x258] sm:$0xff]
    %v104 = vld [vmem:[#allocation2 + $0x260] sm:$0xff]
    %v105 = vld [vmem:[#allocation2 + $0x268] sm:$0xff]
    %v106 = vld [vmem:[#allocation2 + $0x270] sm:$0xff]
    %v107 = vld [vmem:[#allocation2 + $0x278] sm:$0xff]
    %v108 = vld [vmem:[#allocation2 + $0x280] sm:$0xff]
    %v109 = vld [vmem:[#allocation2 + $0x288] sm:$0xff]
    %v110 = vld [vmem:[#allocation2 + $0x290] sm:$0xff]
    %v111 = vld [vmem:[#allocation2 + $0x298] sm:$0xff]
    %v112 = vld [vmem:[#allocation2 + $0x2a0] sm:$0xff]
    %v113 = vld [vmem:[#allocation2 + $0x2a8] sm:$0xff]
    %v114 = vld [vmem:[#allocation2 + $0x2b0] sm:$0xff]
    %v115 = vld [vmem:[#allocation2 + $0x2b8] sm:$0xff]
    %v116 = vld [vmem:[#allocation2 + $0x2c0] sm:$0xff]
    %v117 = vld [vmem:[#allocation2 + $0x2c8] sm:$0xff]
    %v118 = vld [vmem:[#allocation2 + $0x2d0] sm:$0xff]
    %v119 = vld [vmem:[#allocation2 + $0x2d8] sm:$0xff]
    %v120 = vld [vmem:[#allocation2 + $0x2e0] sm:$0xff]
    %v121 = vld [vmem:[#allocation2 + $0x2e8] sm:$0xff]
    %v122 = vld [vmem:[#allocation2 + $0x2f0] sm:$0xff]
    %v123 = vld [vmem:[#allocation2 + $0x2f8] sm:$0xff]
    %v124 = vld [vmem:[#allocation2 + $0x300] sm:$0xff]
    %v125 = vld [vmem:[#allocation2 + $0x308] sm:$0xff]
    %v126 = vld [vmem:[#allocation2 + $0x310] sm:$0xff]
    %v127 = vld [vmem:[#allocation2 + $0x318] sm:$0xff]
    %v128 = vld [vmem:[#allocation2 + $0x320] sm:$0xff]
    %v129 = vld [vmem:[#allocation2 + $0x328] sm:$0xff]
    %v130 = vld [vmem:[#allocation2 + $0x330] sm:$0xff]
    %v131 = vld [vmem:[#allocation2 + $0x338] sm:$0xff]
    %v132 = vld [vmem:[#allocation2 + $0x340] sm:$0xff]
    %v133 = vld [vmem:[#allocation2 + $0x348] sm:$0xff]
    %v134 = vld [vmem:[#allocation2 + $0x350] sm:$0xff]
    %v135 = vld [vmem:[#allocation2 + $0x358] sm:$0xff]
    %v136 = vld [vmem:[#allocation2 + $0x360] sm:$0xff]
    %v137 = vld [vmem:[#allocation2 + $0x368] sm:$0xff]
    %v138 = vld [vmem:[#allocation2 + $0x370] sm:$0xff]
    %v139 = vld [vmem:[#allocation2 + $0x378] sm:$0xff]
    %v140 = vld [vmem:[#allocation2 + $0x380] sm:$0xff]
    %v141 = vld [vmem:[#allocation2 + $0x388] sm:$0xff]
    %v142 = vld [vmem:[#allocation2 + $0x390] sm:$0xff]
    %v143 = vld [vmem:[#allocation2 + $0x398] sm:$0xff]
    %v144 = vld [vmem:[#allocation2 + $0x3a0] sm:$0xff]
    %v145 = vld [vmem:[#allocation2 + $0x3a8] sm:$0xff]
    %v146 = vld [vmem:[#allocation2 + $0x3b0] sm:$0xff]
    %v147 = vld [vmem:[#allocation2 + $0x3b8] sm:$0xff]
    %v148 = vld [vmem:[#allocation2 + $0x3c0] sm:$0xff]
    %v149 = vld [vmem:[#allocation2 + $0x3c8] sm:$0xff]
    %v150 = vld [vmem:[#allocation2 + $0x3d0] sm:$0xff]
    %v151 = vld [vmem:[#allocation2 + $0x3d8] sm:$0xff]
    %v152 = vld [vmem:[#allocation2 + $0x3e0] sm:$0xff]
    %v153 = vld [vmem:[#allocation2 + $0x3e8] sm:$0xff]
    %v154 = vld [vmem:[#allocation2 + $0x3f0] sm:$0xff]
    %v155 = vld [vmem:[#allocation2 + $0x3f8] sm:$0xff]
    %157 = vst [vmem:[#allocation1] ss:$9 sm:$0xff] %v27
    %v158 = vld [vmem:[#allocation1] sm:$0xff]
    %v159 = vld [vmem:[#allocation1 + $0x9] sm:$0xff]
    %v160 = vld [vmem:[#allocation1 + $0x12] sm:$0xff]
    %v161 = vld [vmem:[#allocation1 + $0x1b] sm:$0xff]
    %v162 = vld [vmem:[#allocation1 + $0x24] sm:$0xff]
    %v163 = vld [vmem:[#allocation1 + $0x2d] sm:$0xff]
    %v164 = vld [vmem:[#allocation1 + $0x36] sm:$0xff]
    %v165 = vld [vmem:[#allocation1 + $0x3f] sm:$0xff]
    %v302 = vunpack.c.l.b16 %v28
    %v303 = vunpack.c.h.b16 %v28
    %v304 = vunpack.c.l.b16 %v29
    %v305 = vunpack.c.h.b16 %v29
    %v306 = vunpack.c.l.b16 %v30
    %v307 = vunpack.c.h.b16 %v30
    %v308 = vunpack.c.l.b16 %v31
    %v309 = vunpack.c.h.b16 %v31
    %v310 = vunpack.c.l.b16 %v32
    %v311 = vunpack.c.h.b16 %v32
    %v312 = vunpack.c.l.b16 %v33
    %v313 = vunpack.c.h.b16 %v33
    %v314 = vunpack.c.l.b16 %v34
    %v315 = vunpack.c.h.b16 %v34
    %v316 = vunpack.c.l.b16 %v35
    %v317 = vunpack.c.h.b16 %v35
    %v318 = vunpack.c.l.b16 %v36
    %v319 = vunpack.c.h.b16 %v36
    %v320 = vunpack.c.l.b16 %v37
    %v321 = vunpack.c.h.b16 %v37
    %v322 = vunpack.c.l.b16 %v38
    %v323 = vunpack.c.h.b16 %v38
    %v324 = vunpack.c.l.b16 %v39
    %v325 = vunpack.c.h.b16 %v39
    %v326 = vunpack.c.l.b16 %v40
    %v327 = vunpack.c.h.b16 %v40
    %v328 = vunpack.c.l.b16 %v41
    %v329 = vunpack.c.h.b16 %v41
    %v330 = vunpack.c.l.b16 %v42
    %v331 = vunpack.c.h.b16 %v42
    %v332 = vunpack.c.l.b16 %v43
    %v333 = vunpack.c.h.b16 %v43
    %v334 = vunpack.c.l.b16 %v44
    %v335 = vunpack.c.h.b16 %v44
    %v336 = vunpack.c.l.b16 %v45
    %v337 = vunpack.c.h.b16 %v45
    %v338 = vunpack.c.l.b16 %v46
    %v339 = vunpack.c.h.b16 %v46
    %v340 = vunpack.c.l.b16 %v47
    %v341 = vunpack.c.h.b16 %v47
    %v342 = vunpack.c.l.b16 %v48
    %v343 = vunpack.c.h.b16 %v48
    %v344 = vunpack.c.l.b16 %v49
    %v345 = vunpack.c.h.b16 %v49
    %v346 = vunpack.c.l.b16 %v50
    %v347 = vunpack.c.h.b16 %v50
    %v348 = vunpack.c.l.b16 %v51
    %v349 = vunpack.c.h.b16 %v51
    %v350 = vunpack.c.l.b16 %v52
    %v351 = vunpack.c.h.b16 %v52
    %v352 = vunpack.c.l.b16 %v53
    %v353 = vunpack.c.h.b16 %v53
    %v354 = vunpack.c.l.b16 %v54
    %v355 = vunpack.c.h.b16 %v54
    %v356 = vunpack.c.l.b16 %v55
    %v357 = vunpack.c.h.b16 %v55
    %v358 = vunpack.c.l.b16 %v56
    %v359 = vunpack.c.h.b16 %v56
    %v360 = vunpack.c.l.b16 %v57
    %v361 = vunpack.c.h.b16 %v57
    %v362 = vunpack.c.l.b16 %v58
    %v363 = vunpack.c.h.b16 %v58
    %v364 = vunpack.c.l.b16 %v59
    %v365 = vunpack.c.h.b16 %v59
    %v366 = vunpack.c.l.b16 %v60
    %v367 = vunpack.c.h.b16 %v60
    %v368 = vunpack.c.l.b16 %v61
    %v369 = vunpack.c.h.b16 %v61
    %v370 = vunpack.c.l.b16 %v62
    %v371 = vunpack.c.h.b16 %v62
    %v372 = vunpack.c.l.b16 %v63
    %v373 = vunpack.c.h.b16 %v63
    %v374 = vunpack.c.l.b16 %v64
    %v375 = vunpack.c.h.b16 %v64
    %v376 = vunpack.c.l.b16 %v65
    %v377 = vunpack.c.h.b16 %v65
    %v378 = vunpack.c.l.b16 %v66
    %v379 = vunpack.c.h.b16 %v66
    %v380 = vunpack.c.l.b16 %v67
    %v381 = vunpack.c.h.b16 %v67
    %v382 = vunpack.c.l.b16 %v68
    %v383 = vunpack.c.h.b16 %v68
    %v384 = vunpack.c.l.b16 %v69
    %v385 = vunpack.c.h.b16 %v69
    %v386 = vunpack.c.l.b16 %v70
    %v387 = vunpack.c.h.b16 %v70
    %v388 = vunpack.c.l.b16 %v71
    %v389 = vunpack.c.h.b16 %v71
    %v390 = vunpack.c.l.b16 %v72
    %v391 = vunpack.c.h.b16 %v72
    %v392 = vunpack.c.l.b16 %v73
    %v393 = vunpack.c.h.b16 %v73
    %v394 = vunpack.c.l.b16 %v74
    %v395 = vunpack.c.h.b16 %v74
    %v396 = vunpack.c.l.b16 %v75
    %v397 = vunpack.c.h.b16 %v75
    %v398 = vunpack.c.l.b16 %v76
    %v399 = vunpack.c.h.b16 %v76
    %v400 = vunpack.c.l.b16 %v77
    %v401 = vunpack.c.h.b16 %v77
    %v402 = vunpack.c.l.b16 %v78
    %v403 = vunpack.c.h.b16 %v78
    %v404 = vunpack.c.l.b16 %v79
    %v405 = vunpack.c.h.b16 %v79
    %v406 = vunpack.c.l.b16 %v80
    %v407 = vunpack.c.h.b16 %v80
    %v408 = vunpack.c.l.b16 %v81
    %v409 = vunpack.c.h.b16 %v81
    %v410 = vunpack.c.l.b16 %v82
    %v411 = vunpack.c.h.b16 %v82
    %v412 = vunpack.c.l.b16 %v83
    %v413 = vunpack.c.h.b16 %v83
    %v414 = vunpack.c.l.b16 %v84
    %v415 = vunpack.c.h.b16 %v84
    %v416 = vunpack.c.l.b16 %v85
    %v417 = vunpack.c.h.b16 %v85
    %v418 = vunpack.c.l.b16 %v86
    %v419 = vunpack.c.h.b16 %v86
    %v420 = vunpack.c.l.b16 %v87
    %v421 = vunpack.c.h.b16 %v87
    %v422 = vunpack.c.l.b16 %v88
    %v423 = vunpack.c.h.b16 %v88
    %v424 = vunpack.c.l.b16 %v89
    %v425 = vunpack.c.h.b16 %v89
    %v426 = vunpack.c.l.b16 %v90
    %v427 = vunpack.c.h.b16 %v90
    %v428 = vunpack.c.l.b16 %v91
    %v429 = vunpack.c.h.b16 %v91
    %v430 = vunpack.c.l.b16 %v92
    %v431 = vunpack.c.h.b16 %v92
    %v432 = vunpack.c.l.b16 %v93
    %v433 = vunpack.c.h.b16 %v93
    %v434 = vunpack.c.l.b16 %v94
    %v435 = vunpack.c.h.b16 %v94
    %v436 = vunpack.c.l.b16 %v95
    %v437 = vunpack.c.h.b16 %v95
    %v438 = vunpack.c.l.b16 %v96
    %v439 = vunpack.c.h.b16 %v96
    %v440 = vunpack.c.l.b16 %v97
    %v441 = vunpack.c.h.b16 %v97
    %v442 = vunpack.c.l.b16 %v98
    %v443 = vunpack.c.h.b16 %v98
    %v444 = vunpack.c.l.b16 %v99
    %v445 = vunpack.c.h.b16 %v99
    %v446 = vunpack.c.l.b16 %v100
    %v447 = vunpack.c.h.b16 %v100
    %v448 = vunpack.c.l.b16 %v101
    %v449 = vunpack.c.h.b16 %v101
    %v450 = vunpack.c.l.b16 %v102
    %v451 = vunpack.c.h.b16 %v102
    %v452 = vunpack.c.l.b16 %v103
    %v453 = vunpack.c.h.b16 %v103
    %v454 = vunpack.c.l.b16 %v104
    %v455 = vunpack.c.h.b16 %v104
    %v456 = vunpack.c.l.b16 %v105
    %v457 = vunpack.c.h.b16 %v105
    %v458 = vunpack.c.l.b16 %v106
    %v459 = vunpack.c.h.b16 %v106
    %v460 = vunpack.c.l.b16 %v107
    %v461 = vunpack.c.h.b16 %v107
    %v462 = vunpack.c.l.b16 %v108
    %v463 = vunpack.c.h.b16 %v108
    %v464 = vunpack.c.l.b16 %v109
    %v465 = vunpack.c.h.b16 %v109
    %v466 = vunpack.c.l.b16 %v110
    %v467 = vunpack.c.h.b16 %v110
    %v468 = vunpack.c.l.b16 %v111
    %v469 = vunpack.c.h.b16 %v111
    %v470 = vunpack.c.l.b16 %v112
    %v471 = vunpack.c.h.b16 %v112
    %v472 = vunpack.c.l.b16 %v113
    %v473 = vunpack.c.h.b16 %v113
    %v474 = vunpack.c.l.b16 %v114
    %v475 = vunpack.c.h.b16 %v114
    %v476 = vunpack.c.l.b16 %v115
    %v477 = vunpack.c.h.b16 %v115
    %v478 = vunpack.c.l.b16 %v116
    %v479 = vunpack.c.h.b16 %v116
    %v480 = vunpack.c.l.b16 %v117
    %v481 = vunpack.c.h.b16 %v117
    %v482 = vunpack.c.l.b16 %v118
    %v483 = vunpack.c.h.b16 %v118
    %v484 = vunpack.c.l.b16 %v119
    %v485 = vunpack.c.h.b16 %v119
    %v486 = vunpack.c.l.b16 %v120
    %v487 = vunpack.c.h.b16 %v120
    %v488 = vunpack.c.l.b16 %v121
    %v489 = vunpack.c.h.b16 %v121
    %v490 = vunpack.c.l.b16 %v122
    %v491 = vunpack.c.h.b16 %v122
    %v492 = vunpack.c.l.b16 %v123
    %v493 = vunpack.c.h.b16 %v123
    %v494 = vunpack.c.l.b16 %v124
    %v495 = vunpack.c.h.b16 %v124
    %v496 = vunpack.c.l.b16 %v125
    %v497 = vunpack.c.h.b16 %v125
    %v498 = vunpack.c.l.b16 %v126
    %v499 = vunpack.c.h.b16 %v126
    %v500 = vunpack.c.l.b16 %v127
    %v501 = vunpack.c.h.b16 %v127
    %v502 = vunpack.c.l.b16 %v128
    %v503 = vunpack.c.h.b16 %v128
    %v504 = vunpack.c.l.b16 %v129
    %v505 = vunpack.c.h.b16 %v129
    %v506 = vunpack.c.l.b16 %v130
    %v507 = vunpack.c.h.b16 %v130
    %v508 = vunpack.c.l.b16 %v131
    %v509 = vunpack.c.h.b16 %v131
    %v510 = vunpack.c.l.b16 %v132
    %v511 = vunpack.c.h.b16 %v132
    %v512 = vunpack.c.l.b16 %v133
    %v513 = vunpack.c.h.b16 %v133
    %v514 = vunpack.c.l.b16 %v134
    %v515 = vunpack.c.h.b16 %v134
    %v516 = vunpack.c.l.b16 %v135
    %v517 = vunpack.c.h.b16 %v135
    %v518 = vunpack.c.l.b16 %v136
    %v519 = vunpack.c.h.b16 %v136
    %v520 = vunpack.c.l.b16 %v137
    %v521 = vunpack.c.h.b16 %v137
    %v522 = vunpack.c.l.b16 %v138
    %v523 = vunpack.c.h.b16 %v138
    %v524 = vunpack.c.l.b16 %v139
    %v525 = vunpack.c.h.b16 %v139
    %v526 = vunpack.c.l.b16 %v140
    %v527 = vunpack.c.h.b16 %v140
    %v528 = vunpack.c.l.b16 %v141
    %v529 = vunpack.c.h.b16 %v141
    %v530 = vunpack.c.l.b16 %v142
    %v531 = vunpack.c.h.b16 %v142
    %v532 = vunpack.c.l.b16 %v143
    %v533 = vunpack.c.h.b16 %v143
    %v534 = vunpack.c.l.b16 %v144
    %v535 = vunpack.c.h.b16 %v144
    %v536 = vunpack.c.l.b16 %v145
    %v537 = vunpack.c.h.b16 %v145
    %v538 = vunpack.c.l.b16 %v146
    %v539 = vunpack.c.h.b16 %v146
    %v540 = vunpack.c.l.b16 %v147
    %v541 = vunpack.c.h.b16 %v147
    %v542 = vunpack.c.l.b16 %v148
    %v543 = vunpack.c.h.b16 %v148
    %v544 = vunpack.c.l.b16 %v149
    %v545 = vunpack.c.h.b16 %v149
    %v546 = vunpack.c.l.b16 %v150
    %v547 = vunpack.c.h.b16 %v150
    %v548 = vunpack.c.l.b16 %v151
    %v549 = vunpack.c.h.b16 %v151
    %v550 = vunpack.c.l.b16 %v152
    %v551 = vunpack.c.h.b16 %v152
    %v552 = vunpack.c.l.b16 %v153
    %v553 = vunpack.c.h.b16 %v153
    %v554 = vunpack.c.l.b16 %v154
    %v555 = vunpack.c.h.b16 %v154
    %v556 = vunpack.c.l.b16 %v155
    %v557 = vunpack.c.h.b16 %v155
    %v558 = vpack.c.b16 %v304, %v302
    %v559 = vpack.c.b16 %v305, %v303
    %v560 = vpack.c.b16 %v308, %v306
    %v561 = vpack.c.b16 %v309, %v307
    %v562 = vpack.c.b16 %v312, %v310
    %v563 = vpack.c.b16 %v313, %v311
    %v564 = vpack.c.b16 %v316, %v314
    %v565 = vpack.c.b16 %v317, %v315
    %v566 = vpack.c.b16 %v320, %v318
    %v567 = vpack.c.b16 %v321, %v319
    %v568 = vpack.c.b16 %v324, %v322
    %v569 = vpack.c.b16 %v325, %v323
    %v570 = vpack.c.b16 %v328, %v326
    %v571 = vpack.c.b16 %v329, %v327
    %v572 = vpack.c.b16 %v332, %v330
    %v573 = vpack.c.b16 %v333, %v331
    %v574 = vpack.c.b16 %v336, %v334
    %v575 = vpack.c.b16 %v337, %v335
    %v576 = vpack.c.b16 %v340, %v338
    %v577 = vpack.c.b16 %v341, %v339
    %v578 = vpack.c.b16 %v344, %v342
    %v579 = vpack.c.b16 %v345, %v343
    %v580 = vpack.c.b16 %v348, %v346
    %v581 = vpack.c.b16 %v349, %v347
    %v582 = vpack.c.b16 %v352, %v350
    %v583 = vpack.c.b16 %v353, %v351
    %v584 = vpack.c.b16 %v356, %v354
    %v585 = vpack.c.b16 %v357, %v355
    %v586 = vpack.c.b16 %v360, %v358
    %v587 = vpack.c.b16 %v361, %v359
    %v588 = vpack.c.b16 %v364, %v362
    %v589 = vpack.c.b16 %v365, %v363
    %v590 = vpack.c.b16 %v368, %v366
    %v591 = vpack.c.b16 %v369, %v367
    %v592 = vpack.c.b16 %v372, %v370
    %v593 = vpack.c.b16 %v373, %v371
    %v594 = vpack.c.b16 %v376, %v374
    %v595 = vpack.c.b16 %v377, %v375
    %v596 = vpack.c.b16 %v380, %v378
    %v597 = vpack.c.b16 %v381, %v379
    %v598 = vpack.c.b16 %v384, %v382
    %v599 = vpack.c.b16 %v385, %v383
    %v600 = vpack.c.b16 %v388, %v386
    %v601 = vpack.c.b16 %v389, %v387
    %v602 = vpack.c.b16 %v392, %v390
    %v603 = vpack.c.b16 %v393, %v391
    %v604 = vpack.c.b16 %v396, %v394
    %v605 = vpack.c.b16 %v397, %v395
    %v606 = vpack.c.b16 %v400, %v398
    %v607 = vpack.c.b16 %v401, %v399
    %v608 = vpack.c.b16 %v404, %v402
    %v609 = vpack.c.b16 %v405, %v403
    %v610 = vpack.c.b16 %v408, %v406
    %v611 = vpack.c.b16 %v409, %v407
    %v612 = vpack.c.b16 %v412, %v410
    %v613 = vpack.c.b16 %v413, %v411
    %v614 = vpack.c.b16 %v416, %v414
    %v615 = vpack.c.b16 %v417, %v415
    %v616 = vpack.c.b16 %v420, %v418
    %v617 = vpack.c.b16 %v421, %v419
    %v618 = vpack.c.b16 %v424, %v422
    %v619 = vpack.c.b16 %v425, %v423
    %v620 = vpack.c.b16 %v428, %v426
    %v621 = vpack.c.b16 %v429, %v427
    %v622 = vpack.c.b16 %v432, %v430
    %v623 = vpack.c.b16 %v433, %v431
    %v624 = vpack.c.b16 %v436, %v434
    %v625 = vpack.c.b16 %v437, %v435
    %v626 = vpack.c.b16 %v440, %v438
    %v627 = vpack.c.b16 %v441, %v439
    %v628 = vpack.c.b16 %v444, %v442
    %v629 = vpack.c.b16 %v445, %v443
    %v630 = vpack.c.b16 %v448, %v446
    %v631 = vpack.c.b16 %v449, %v447
    %v632 = vpack.c.b16 %v452, %v450
    %v633 = vpack.c.b16 %v453, %v451
    %v634 = vpack.c.b16 %v456, %v454
    %v635 = vpack.c.b16 %v457, %v455
    %v636 = vpack.c.b16 %v460, %v458
    %v637 = vpack.c.b16 %v461, %v459
    %v638 = vpack.c.b16 %v464, %v462
    %v639 = vpack.c.b16 %v465, %v463
    %v640 = vpack.c.b16 %v468, %v466
    %v641 = vpack.c.b16 %v469, %v467
    %v642 = vpack.c.b16 %v472, %v470
    %v643 = vpack.c.b16 %v473, %v471
    %v644 = vpack.c.b16 %v476, %v474
    %v645 = vpack.c.b16 %v477, %v475
    %v646 = vpack.c.b16 %v480, %v478
    %v647 = vpack.c.b16 %v481, %v479
    %v648 = vpack.c.b16 %v484, %v482
    %v649 = vpack.c.b16 %v485, %v483
    %v650 = vpack.c.b16 %v488, %v486
    %v651 = vpack.c.b16 %v489, %v487
    %v652 = vpack.c.b16 %v492, %v490
    %v653 = vpack.c.b16 %v493, %v491
    %v654 = vpack.c.b16 %v496, %v494
    %v655 = vpack.c.b16 %v497, %v495
    %v656 = vpack.c.b16 %v500, %v498
    %v657 = vpack.c.b16 %v501, %v499
    %v658 = vpack.c.b16 %v504, %v502
    %v659 = vpack.c.b16 %v505, %v503
    %v660 = vpack.c.b16 %v508, %v506
    %v661 = vpack.c.b16 %v509, %v507
    %v662 = vpack.c.b16 %v512, %v510
    %v663 = vpack.c.b16 %v513, %v511
    %v664 = vpack.c.b16 %v516, %v514
    %v665 = vpack.c.b16 %v517, %v515
    %v666 = vpack.c.b16 %v520, %v518
    %v667 = vpack.c.b16 %v521, %v519
    %v668 = vpack.c.b16 %v524, %v522
    %v669 = vpack.c.b16 %v525, %v523
    %v670 = vpack.c.b16 %v528, %v526
    %v671 = vpack.c.b16 %v529, %v527
    %v672 = vpack.c.b16 %v532, %v530
    %v673 = vpack.c.b16 %v533, %v531
    %v674 = vpack.c.b16 %v536, %v534
    %v675 = vpack.c.b16 %v537, %v535
    %v676 = vpack.c.b16 %v540, %v538
    %v677 = vpack.c.b16 %v541, %v539
    %v678 = vpack.c.b16 %v544, %v542
    %v679 = vpack.c.b16 %v545, %v543
    %v680 = vpack.c.b16 %v548, %v546
    %v681 = vpack.c.b16 %v549, %v547
    %v682 = vpack.c.b16 %v552, %v550
    %v683 = vpack.c.b16 %v553, %v551
    %v684 = vpack.c.b16 %v556, %v554
    %v685 = vpack.c.b16 %v557, %v555
    %814 = vmatpush.bf16.msra.mxu0 %v572
    %815 = vmatpush.bf16.msra.mxu0 %v570
    %816 = vmatpush.bf16.msra.mxu0 %v568
    %817 = vmatpush.bf16.msra.mxu0 %v566
    %818 = vmatpush.bf16.msra.mxu0 %v564
    %819 = vmatpush.bf16.msra.mxu0 %v562
    %820 = vmatpush.bf16.msra.mxu0 %v560
    %821 = vmatpush.bf16.msra.mxu0 %v558
    %822 = vmatmul.bf16.gmra.mxu0 %v158
    %v823 = vpop.f32.mrf.mxu0
    %v824 = vadd.f32 0.0, %v823
    %v825 = vpop.f32.mrf.mxu0
    %826 = vdwg.mxu0
    %827 = vmatpush.bf16.msra.mxu0 %v588
    %828 = vmatpush.bf16.msra.mxu0 %v586
    %829 = vmatpush.bf16.msra.mxu0 %v584
    %830 = vmatpush.bf16.msra.mxu0 %v582
    %831 = vmatpush.bf16.msra.mxu0 %v580
    %832 = vmatpush.bf16.msra.mxu0 %v578
    %833 = vmatpush.bf16.msra.mxu0 %v576
    %834 = vmatpush.bf16.msra.mxu0 %v574
    %835 = vmatmul.bf16.gmra.mxu0 %v159
    %v836 = vpop.f32.mrf.mxu0
    %v837 = vadd.f32 %v824, %v836
    %v838 = vpop.f32.mrf.mxu0
    %839 = vdwg.mxu0
    %840 = vmatpush.bf16.msra.mxu0 %v604
    %841 = vmatpush.bf16.msra.mxu0 %v602
    %842 = vmatpush.bf16.msra.mxu0 %v600
    %843 = vmatpush.bf16.msra.mxu0 %v598
    %844 = vmatpush.bf16.msra.mxu0 %v596
    %845 = vmatpush.bf16.msra.mxu0 %v594
    %846 = vmatpush.bf16.msra.mxu0 %v592
    %847 = vmatpush.bf16.msra.mxu0 %v590
    %848 = vmatmul.bf16.gmra.mxu0 %v160
    %v849 = vpop.f32.mrf.mxu0
    %v850 = vadd.f32 %v837, %v849
    %v851 = vpop.f32.mrf.mxu0
    %852 = vdwg.mxu0
    %853 = vmatpush.bf16.msra.mxu0 %v620
    %854 = vmatpush.bf16.msra.mxu0 %v618
    %855 = vmatpush.bf16.msra.mxu0 %v616
    %856 = vmatpush.bf16.msra.mxu0 %v614
    %857 = vmatpush.bf16.msra.mxu0 %v612
    %858 = vmatpush.bf16.msra.mxu0 %v610
    %859 = vmatpush.bf16.msra.mxu0 %v608
    %860 = vmatpush.bf16.msra.mxu0 %v606
    %861 = vmatmul.bf16.gmra.mxu0 %v161
    %v862 = vpop.f32.mrf.mxu0
    %v863 = vadd.f32 %v850, %v862
    %v864 = vpop.f32.mrf.mxu0
    %865 = vdwg.mxu0
    %866 = vmatpush.bf16.msra.mxu0 %v636
    %867 = vmatpush.bf16.msra.mxu0 %v634
    %868 = vmatpush.bf16.msra.mxu0 %v632
    %869 = vmatpush.bf16.msra.mxu0 %v630
    %870 = vmatpush.bf16.msra.mxu0 %v628
    %871 = vmatpush.bf16.msra.mxu0 %v626
    %872 = vmatpush.bf16.msra.mxu0 %v624
    %873 = vmatpush.bf16.msra.mxu0 %v622
    %874 = vmatmul.bf16.gmra.mxu0 %v162
    %v875 = vpop.f32.mrf.mxu0
    %v876 = vadd.f32 %v863, %v875
    %v877 = vpop.f32.mrf.mxu0
    %878 = vdwg.mxu0
    %879 = vmatpush.bf16.msra.mxu0 %v652
    %880 = vmatpush.bf16.msra.mxu0 %v650
    %881 = vmatpush.bf16.msra.mxu0 %v648
    %882 = vmatpush.bf16.msra.mxu0 %v646
    %883 = vmatpush.bf16.msra.mxu0 %v644
    %884 = vmatpush.bf16.msra.mxu0 %v642
    %885 = vmatpush.bf16.msra.mxu0 %v640
    %886 = vmatpush.bf16.msra.mxu0 %v638
    %887 = vmatmul.bf16.gmra.mxu0 %v163
    %v888 = vpop.f32.mrf.mxu0
    %v889 = vadd.f32 %v876, %v888
    %v890 = vpop.f32.mrf.mxu0
    %891 = vdwg.mxu0
    %892 = vmatpush.bf16.msra.mxu0 %v668
    %893 = vmatpush.bf16.msra.mxu0 %v666
    %894 = vmatpush.bf16.msra.mxu0 %v664
    %895 = vmatpush.bf16.msra.mxu0 %v662
    %896 = vmatpush.bf16.msra.mxu0 %v660
    %897 = vmatpush.bf16.msra.mxu0 %v658
    %898 = vmatpush.bf16.msra.mxu0 %v656
    %899 = vmatpush.bf16.msra.mxu0 %v654
    %900 = vmatmul.bf16.gmra.mxu0 %v164
    %v901 = vpop.f32.mrf.mxu0
    %v902 = vadd.f32 %v889, %v901
    %v903 = vpop.f32.mrf.mxu0
    %904 = vdwg.mxu0
    %905 = vmatpush.bf16.msra.mxu0 %v684
    %906 = vmatpush.bf16.msra.mxu0 %v682
    %907 = vmatpush.bf16.msra.mxu0 %v680
    %908 = vmatpush.bf16.msra.mxu0 %v678
    %909 = vmatpush.bf16.msra.mxu0 %v676
    %910 = vmatpush.bf16.msra.mxu0 %v674
    %911 = vmatpush.bf16.msra.mxu0 %v672
    %912 = vmatpush.bf16.msra.mxu0 %v670
    %913 = vmatmul.bf16.gmra.mxu0 %v165
    %v914 = vpop.f32.mrf.mxu0
    %v915 = vadd.f32 %v902, %v914
    %v916 = vpop.f32.mrf.mxu0
    %917 = vdwg.mxu0
    %918 = vmatpush.bf16.msra.mxu0 %v573
    %919 = vmatpush.bf16.msra.mxu0 %v571
    %920 = vmatpush.bf16.msra.mxu0 %v569
    %921 = vmatpush.bf16.msra.mxu0 %v567
    %922 = vmatpush.bf16.msra.mxu0 %v565
    %923 = vmatpush.bf16.msra.mxu0 %v563
    %924 = vmatpush.bf16.msra.mxu0 %v561
    %925 = vmatpush.bf16.msra.mxu0 %v559
    %926 = vmatmul.bf16.gmra.mxu0 %v158
    %v927 = vpop.f32.mrf.mxu0
    %v928 = vadd.f32 0.0, %v927
    %v929 = vpop.f32.mrf.mxu0
    %930 = vdwg.mxu0
    %931 = vmatpush.bf16.msra.mxu0 %v589
    %932 = vmatpush.bf16.msra.mxu0 %v587
    %933 = vmatpush.bf16.msra.mxu0 %v585
    %934 = vmatpush.bf16.msra.mxu0 %v583
    %935 = vmatpush.bf16.msra.mxu0 %v581
    %936 = vmatpush.bf16.msra.mxu0 %v579
    %937 = vmatpush.bf16.msra.mxu0 %v577
    %938 = vmatpush.bf16.msra.mxu0 %v575
    %939 = vmatmul.bf16.gmra.mxu0 %v159
    %v940 = vpop.f32.mrf.mxu0
    %v941 = vadd.f32 %v928, %v940
    %v942 = vpop.f32.mrf.mxu0
    %943 = vdwg.mxu0
    %944 = vmatpush.bf16.msra.mxu0 %v605
    %945 = vmatpush.bf16.msra.mxu0 %v603
    %946 = vmatpush.bf16.msra.mxu0 %v601
    %947 = vmatpush.bf16.msra.mxu0 %v599
    %948 = vmatpush.bf16.msra.mxu0 %v597
    %949 = vmatpush.bf16.msra.mxu0 %v595
    %950 = vmatpush.bf16.msra.mxu0 %v593
    %951 = vmatpush.bf16.msra.mxu0 %v591
    %952 = vmatmul.bf16.gmra.mxu0 %v160
    %v953 = vpop.f32.mrf.mxu0
    %v954 = vadd.f32 %v941, %v953
    %v955 = vpop.f32.mrf.mxu0
    %956 = vdwg.mxu0
    %957 = vmatpush.bf16.msra.mxu0 %v621
    %958 = vmatpush.bf16.msra.mxu0 %v619
    %959 = vmatpush.bf16.msra.mxu0 %v617
    %960 = vmatpush.bf16.msra.mxu0 %v615
    %961 = vmatpush.bf16.msra.mxu0 %v613
    %962 = vmatpush.bf16.msra.mxu0 %v611
    %963 = vmatpush.bf16.msra.mxu0 %v609
    %964 = vmatpush.bf16.msra.mxu0 %v607
    %965 = vmatmul.bf16.gmra.mxu0 %v161
    %v966 = vpop.f32.mrf.mxu0
    %v967 = vadd.f32 %v954, %v966
    %v968 = vpop.f32.mrf.mxu0
    %969 = vdwg.mxu0
    %970 = vmatpush.bf16.msra.mxu0 %v637
    %971 = vmatpush.bf16.msra.mxu0 %v635
    %972 = vmatpush.bf16.msra.mxu0 %v633
    %973 = vmatpush.bf16.msra.mxu0 %v631
    %974 = vmatpush.bf16.msra.mxu0 %v629
    %975 = vmatpush.bf16.msra.mxu0 %v627
    %976 = vmatpush.bf16.msra.mxu0 %v625
    %977 = vmatpush.bf16.msra.mxu0 %v623
    %978 = vmatmul.bf16.gmra.mxu0 %v162
    %v979 = vpop.f32.mrf.mxu0
    %v980 = vadd.f32 %v967, %v979
    %v981 = vpop.f32.mrf.mxu0
    %982 = vdwg.mxu0
    %983 = vmatpush.bf16.msra.mxu0 %v653
    %984 = vmatpush.bf16.msra.mxu0 %v651
    %985 = vmatpush.bf16.msra.mxu0 %v649
    %986 = vmatpush.bf16.msra.mxu0 %v647
    %987 = vmatpush.bf16.msra.mxu0 %v645
    %988 = vmatpush.bf16.msra.mxu0 %v643
    %989 = vmatpush.bf16.msra.mxu0 %v641
    %990 = vmatpush.bf16.msra.mxu0 %v639
    %991 = vmatmul.bf16.gmra.mxu0 %v163
    %v992 = vpop.f32.mrf.mxu0
    %v993 = vadd.f32 %v980, %v992
    %v994 = vpop.f32.mrf.mxu0
    %995 = vdwg.mxu0
    %996 = vmatpush.bf16.msra.mxu0 %v669
    %997 = vmatpush.bf16.msra.mxu0 %v667
    %998 = vmatpush.bf16.msra.mxu0 %v665
    %999 = vmatpush.bf16.msra.mxu0 %v663
    %1000 = vmatpush.bf16.msra.mxu0 %v661
    %1001 = vmatpush.bf16.msra.mxu0 %v659
    %1002 = vmatpush.bf16.msra.mxu0 %v657
    %1003 = vmatpush.bf16.msra.mxu0 %v655
    %1004 = vmatmul.bf16.gmra.mxu0 %v164
    %v1005 = vpop.f32.mrf.mxu0
    %v1006 = vadd.f32 %v993, %v1005
    %v1007 = vpop.f32.mrf.mxu0
    %1008 = vdwg.mxu0
    %1009 = vmatpush.bf16.msra.mxu0 %v685
    %1010 = vmatpush.bf16.msra.mxu0 %v683
    %1011 = vmatpush.bf16.msra.mxu0 %v681
    %1012 = vmatpush.bf16.msra.mxu0 %v679
    %1013 = vmatpush.bf16.msra.mxu0 %v677
    %1014 = vmatpush.bf16.msra.mxu0 %v675
    %1015 = vmatpush.bf16.msra.mxu0 %v673
    %1016 = vmatpush.bf16.msra.mxu0 %v671
    %1017 = vmatmul.bf16.gmra.mxu0 %v165
    %v1018 = vpop.f32.mrf.mxu0
    %v1019 = vadd.f32 %v1006, %v1018
    %v1020 = vpop.f32.mrf.mxu0
    %1021 = vdwg.mxu0
    %v1024 = vrot.slane %v1019, 6
    %vm1025 = vcmask 1041408
    %v1026 = vsel %vm1025, %v915, %v1024
    %1028 = vst [vmem:[%s2] sm:$0xf] %v1026
    // Predicated region
    $region14: #{tcl_forward.1} parent=1 // pred_check
      _
    $region15: #{tcl_forward.1} parent=1 // pred_check_branch
      %1030 = sbr.rel (0) target = $region17
    $region16: #{tcl_forward.1} parent=1 // pred_region
      _
    $region17: #{tcl_forward.1} parent=1 // pred_fallthru
      _
    // Predicated region
    $region18: #{tcl_forward.1} parent=1 // pred_check
      _
    $region19: #{tcl_forward.1} parent=1 // pred_check_branch
      %1032 = sbr.rel (0) target = $region21
    $region20: #{tcl_forward.1} parent=1 // pred_region
      _
    $region21: #{tcl_forward.1} parent=1 // pred_fallthru
      _
    %1033 = vsyncpa [#allocation3], 1

</llo_original>
